<compile_context>
chip_gen: v7x
topology: tpu7x:2x2x1
jax: 0.10.0
libtpu: 0.0.40
codegen_flags: <defaults>
</compile_context>

<pallas_src>
import jax
import jax.numpy as jnp
from jax.experimental import pallas as pl
from jax.experimental.pallas import tpu as pltpu

LN_EPS = 1e-5                    # PyTorch nn.LayerNorm default
DEFAULT_BLOCK_ROWS = 256         # M tile for matmul paths (sweep 512-1024 on v6e)
DEFAULT_LN_BLOCK_ROWS = 1024     # bigger tile for the purely mem-bound LN
VMEM_BUDGET = 20 * 1024 * 1024   # target working set (fits v5e/v6e/v7x scoped)
VMEM_LIMIT_CAP = 48 * 1024 * 1024


def _round_up(n, m):
    return ((n + m - 1) // m) * m


def _pad_dim(d_out):
    # Lane-dense output; 256-multiples so bn >= 256 is always available on v6e/v7x.
    return _round_up(d_out, 128) if d_out <= 128 else _round_up(d_out, 256)


def _pick_block_rows(rows, want):
    want = max(8, _round_up(want, 8))
    return rows if rows <= want else want          # full dim or 8-aligned tile


def _itemsize(dt):
    return jnp.dtype(dt).itemsize


def _vmem_estimate(bm, d_in, bn, x_dt, w_dt, out_dt, with_scratch):
    xb = 2 * bm * d_in * _itemsize(x_dt)           # double-buffered x tile
    wb = 2 * d_in * bn * _itemsize(w_dt)           # weight tile (buffered)
    bb = 2 * bn * 4                                # bias tile
    ob = 2 * bm * bn * _itemsize(out_dt)           # output tile
    sb = bm * d_in * _itemsize(w_dt) if with_scratch else 0   # LN scratch
    return xb + wb + bb + ob + sb


def _compiler_params(est_bytes, dims):
    limit = int(min(VMEM_LIMIT_CAP, max(16 * 1024 * 1024, 2 * est_bytes)))
    return pltpu.CompilerParams(dimension_semantics=dims,
                                vmem_limit_bytes=limit)


def _pick_block_n(d_out_pad, bm, d_in, x_dt, w_dt, out_dt, with_scratch):
    bn = 128
    for cand in (512, 256, 128):
        if cand <= d_out_pad and d_out_pad % cand == 0:
            bn = cand
            if _vmem_estimate(bm, d_in, cand, x_dt, w_dt, out_dt,
                              with_scratch) <= VMEM_BUDGET:
                break
    return bn


# ---------------------------------------------------------------------------
# Standalone LayerNorm kernel (fallback when PreNorm wraps an arbitrary fn)
# ---------------------------------------------------------------------------
def _layernorm_kernel(x_ref, g_ref, b_ref, o_ref):
    x = x_ref[...].astype(jnp.float32)                       # (bm, D)
    inv_d = 1.0 / x.shape[-1]
    s1 = jnp.sum(x, axis=-1, keepdims=True)
    s2 = jnp.sum(x * x, axis=-1, keepdims=True)               # fused pass
    mean = s1 * inv_d
    var = jnp.maximum(s2 * inv_d - mean * mean, 0.0)           # clamp cancellation
    y = (x - mean) * jax.lax.rsqrt(var + LN_EPS)
    y = y * g_ref[...].astype(jnp.float32) + b_ref[...].astype(jnp.float32)
    o_ref[...] = y.astype(o_ref.dtype)


def pallas_layernorm(x, gamma, beta, *, block_rows=DEFAULT_LN_BLOCK_ROWS):
    """x: (B, S, D) -> LayerNorm over D."""
    B, S, D = x.shape
    rows = B * S
    bm = _pick_block_rows(rows, block_rows)
    x2 = x.reshape(rows, D)
    g2 = gamma.reshape(1, D)
    b2 = beta.reshape(1, D)
    est = 2 * (2 * bm * D * _itemsize(x.dtype)) + 4 * D * 4
    out = pl.pallas_call(
        _layernorm_kernel,
        out_shape=jax.ShapeDtypeStruct((rows, D), x.dtype),
        grid=(pl.cdiv(rows, bm),),                 # partial last block, no pad
        in_specs=[
            pl.BlockSpec((bm, D), lambda i: (i, 0)),
            pl.BlockSpec((1, D), lambda i: (0, 0)),
            pl.BlockSpec((1, D), lambda i: (0, 0)),
        ],
        out_specs=pl.BlockSpec((bm, D), lambda i: (i, 0)),
        compiler_params=_compiler_params(est, ("parallel",)),
    )(x2, g2, b2)
    return out.reshape(B, S, D)


# ---------------------------------------------------------------------------
# Fused PreNorm + Linear kernels: LayerNorm(x) @ W + b in one pass.
# gamma/beta are already folded into (w_fold, b_fold) at construction time.
# ---------------------------------------------------------------------------
def _fused_resident_kernel(x_ref, w_ref, b_ref, o_ref):
    x = x_ref[...].astype(jnp.float32)                        # (bm, D_in)
    inv_d = 1.0 / x.shape[-1]
    s1 = jnp.sum(x, axis=-1, keepdims=True)
    s2 = jnp.sum(x * x, axis=-1, keepdims=True)
    mean = s1 * inv_d
    var = jnp.maximum(s2 * inv_d - mean * mean, 0.0)
    xn = (x - mean) * jax.lax.rsqrt(var + LN_EPS)              # gamma/beta folded
    y = jnp.dot(xn.astype(w_ref.dtype), w_ref[...],
                preferred_element_type=jnp.float32)            # MXU, f32 acc
    o_ref[...] = (y + b_ref[...].astype(jnp.float32)).astype(o_ref.dtype)


def _fused_ntiled_kernel(x_ref, w_ref, b_ref, o_ref, xn_ref):
    # LayerNorm once per row tile (j == 0), reused for all N tiles (j axis is
    # "arbitrary" so one core visits every j for a given i).
    @pl.when(pl.program_id(1) == 0)
    def _():
        x = x_ref[...].astype(jnp.float32)
        inv_d = 1.0 / x.shape[-1]
        s1 = jnp.sum(x, axis=-1, keepdims=True)
        s2 = jnp.sum(x * x, axis=-1, keepdims=True)
        mean = s1 * inv_d
        var = jnp.maximum(s2 * inv_d - mean * mean, 0.0)
        xn_ref[...] = ((x - mean) * jax.lax.rsqrt(var + LN_EPS)).astype(xn_ref.dtype)

    y = jnp.dot(xn_ref[...], w_ref[...], preferred_element_type=jnp.float32)
    o_ref[...] = (y + b_ref[...].astype(jnp.float32)).astype(o_ref.dtype)


def fused_prenorm_linear(x, w_fold, b_fold, d_out, *,
                         block_rows=DEFAULT_BLOCK_ROWS, block_n=None,
                         force_ntiled=False):
    """Linear(LayerNorm(x)) fused, with gamma/beta pre-folded.

    x:      (B, S, D_in)
    w_fold: (D_in, D_out_pad)   compute-dtype, gamma-folded, lane-padded
    b_fold: (1, D_out_pad)      f32, beta@W + bias, lane-padded
    """
    B, S, D_in = x.shape
    rows = B * S
    d_out_pad = w_fold.shape[1]
    bm = _pick_block_rows(rows, block_rows)
    x2 = x.reshape(rows, D_in)
    w_dt, out_dt = w_fold.dtype, x.dtype

    est_res = _vmem_estimate(bm, D_in, d_out_pad, x.dtype, w_dt, out_dt, False)
    if not force_ntiled and block_n is None and est_res <= VMEM_BUDGET:
        # Weight-resident: 1-D row grid; weight DMA'd once (constant block idx),
        # LN runs exactly once per row tile.
        out = pl.pallas_call(
            _fused_resident_kernel,
            out_shape=jax.ShapeDtypeStruct((rows, d_out_pad), out_dt),
            grid=(pl.cdiv(rows, bm),),
            in_specs=[
                pl.BlockSpec((bm, D_in), lambda i: (i, 0)),
                pl.BlockSpec((D_in, d_out_pad), lambda i: (0, 0)),
                pl.BlockSpec((1, d_out_pad), lambda i: (0, 0)),
            ],
            out_specs=pl.BlockSpec((bm, d_out_pad), lambda i: (i, 0)),
            compiler_params=_compiler_params(est_res, ("parallel",)),
        )(x2, w_fold, b_fold)
    else:
        # N-tiled fallback (large weights): LN hoisted into a VMEM scratch.
        # TODO(synk): add a K-tiled variant (f32 accumulator, "arbitrary" k
        # axis) for very large D_in that does not fit v7x's 64 MiB VMEM.
        bn = block_n if block_n is not None else _pick_block_n(
            d_out_pad, bm, D_in, x.dtype, w_dt, out_dt, True)
        assert d_out_pad % bn == 0
        est = _vmem_estimate(bm, D_in, bn, x.dtype, w_dt, out_dt, True)
        out = pl.pallas_call(
            _fused_ntiled_kernel,
            out_shape=jax.ShapeDtypeStruct((rows, d_out_pad), out_dt),
            grid=(pl.cdiv(rows, bm), d_out_pad // bn),
            in_specs=[
                pl.BlockSpec((bm, D_in), lambda i, j: (i, 0)),
                pl.BlockSpec((D_in, bn), lambda i, j: (0, j)),
                pl.BlockSpec((1, bn), lambda i, j: (0, j)),
            ],
            out_specs=pl.BlockSpec((bm, bn), lambda i, j: (i, j)),
            scratch_shapes=[pltpu.VMEM((bm, D_in), w_dt)],
            compiler_params=_compiler_params(est, ("parallel", "arbitrary")),
        )(x2, w_fold, b_fold)

    if d_out_pad != d_out:
        out = out[:, :d_out]
    return out.reshape(B, S, d_out)


# ---------------------------------------------------------------------------
# Standalone Linear kernel (unfused fallback path)
# ---------------------------------------------------------------------------
def _linear_kernel(x_ref, w_ref, b_ref, o_ref):
    y = jnp.dot(x_ref[...].astype(w_ref.dtype), w_ref[...],
                preferred_element_type=jnp.float32)
    o_ref[...] = (y + b_ref[...].astype(jnp.float32)).astype(o_ref.dtype)


def pallas_linear(x, w_pad, b_pad, d_out, *,
                  block_rows=DEFAULT_BLOCK_ROWS, block_n=None):
    """x: (B, S, D_in); w_pad: (D_in, D_out_pad) pre-transposed/padded/cast."""
    B, S, D_in = x.shape
    rows = B * S
    d_out_pad = w_pad.shape[1]
    bm = _pick_block_rows(rows, block_rows)
    x2 = x.reshape(rows, D_in)
    w_dt, out_dt = w_pad.dtype, x.dtype

    est_res = _vmem_estimate(bm, D_in, d_out_pad, x.dtype, w_dt, out_dt, False)
    if block_n is None and est_res <= VMEM_BUDGET:
        out = pl.pallas_call(
            _linear_kernel,
            out_shape=jax.ShapeDtypeStruct((rows, d_out_pad), out_dt),
            grid=(pl.cdiv(rows, bm),),
            in_specs=[
                pl.BlockSpec((bm, D_in), lambda i: (i, 0)),
                pl.BlockSpec((D_in, d_out_pad), lambda i: (0, 0)),
                pl.BlockSpec((1, d_out_pad), lambda i: (0, 0)),
            ],
            out_specs=pl.BlockSpec((bm, d_out_pad), lambda i: (i, 0)),
            compiler_params=_compiler_params(est_res, ("parallel",)),
        )(x2, w_pad, b_pad)
    else:
        bn = block_n if block_n is not None else _pick_block_n(
            d_out_pad, bm, D_in, x.dtype, w_dt, out_dt, False)
        assert d_out_pad % bn == 0
        est = _vmem_estimate(bm, D_in, bn, x.dtype, w_dt, out_dt, False)
        out = pl.pallas_call(
            _linear_kernel,
            out_shape=jax.ShapeDtypeStruct((rows, d_out_pad), out_dt),
            grid=(pl.cdiv(rows, bm), d_out_pad // bn),
            in_specs=[
                pl.BlockSpec((bm, D_in), lambda i, j: (i, 0)),
                pl.BlockSpec((D_in, bn), lambda i, j: (0, j)),
                pl.BlockSpec((1, bn), lambda i, j: (0, j)),
            ],
            out_specs=pl.BlockSpec((bm, bn), lambda i, j: (i, j)),
            compiler_params=_compiler_params(est, ("parallel", "arbitrary")),
        )(x2, w_pad, b_pad)

    if d_out_pad != d_out:
        out = out[:, :d_out]
    return out.reshape(B, S, d_out)


# ---------------------------------------------------------------------------
# Module-style wrappers
# ---------------------------------------------------------------------------
class PallasLinear:
    """nn.Linear equivalent. Weight is transposed, padded and cast ONCE."""

    def __init__(self, weight, bias, compute_dtype=jnp.bfloat16):
        weight = jnp.asarray(weight)                 # torch layout (D_out, D_in)
        bias = jnp.asarray(bias)
        self.d_out, self.d_in = weight.shape
        self.compute_dtype = compute_dtype
        self.w_t_f32 = weight.T.astype(jnp.float32)  # (D_in, D_out) for folding
        self.bias_f32 = bias.astype(jnp.float32)
        d_out_pad = _pad_dim(self.d_out)
        pad = d_out_pad - self.d_out
        # Padded, compute-dtype copies for the standalone (unfused) path.
        self.w_pad = jnp.pad(self.w_t_f32, ((0, 0), (0, pad))).astype(compute_dtype)
        self.b_pad = jnp.pad(self.bias_f32, ((0, pad),)).reshape(1, d_out_pad)

    def __call__(self, x, **kwargs):
        return pallas_linear(x, self.w_pad, self.b_pad, self.d_out)


class PreNorm:
    """PreNorm(dim, fn): fn(LayerNorm(x), **kwargs).

    If fn is a PallasLinear (and no kwargs), LayerNorm+Linear run as one fused
    pallas_call: gamma folded into W, beta into b — computed ONCE here.
    Note: gamma is applied at compute_dtype precision (bf16 by default); error
    is negligible for ViT-scale params (use compute_dtype=jnp.float32 if not).
    """

    def __init__(self, dim, fn, gamma=None, beta=None):
        self.dim = dim
        self.fn = fn
        # PyTorch LayerNorm init: weight=1, bias=0 (overridable with trained params)
        self.gamma = (jnp.ones((dim,), jnp.float32) if gamma is None
                      else jnp.asarray(gamma, jnp.float32))
        self.beta = (jnp.zeros((dim,), jnp.float32) if beta is None
                     else jnp.asarray(beta, jnp.float32))
        self._w_fold = None
        self._b_fold = None
        if isinstance(fn, PallasLinear):
            # (xhat*g + b) @ W.T + c == xhat @ (g[:,None]*W.T) + (b @ W.T + c)
            w_f32 = fn.w_t_f32                                    # (D_in, D_out)
            w_fold = self.gamma[:, None] * w_f32
            b_fold = self.beta @ w_f32 + fn.bias_f32
            d_out_pad = fn.w_pad.shape[1]
            pad = d_out_pad - fn.d_out
            self._w_fold = jnp.pad(w_fold, ((0, 0), (0, pad))).astype(fn.compute_dtype)
            self._b_fold = jnp.pad(b_fold, ((0, pad),)).reshape(1, d_out_pad)

    def __call__(self, x, **kwargs):
        if self._w_fold is not None and not kwargs:
            return fused_prenorm_linear(x, self._w_fold, self._b_fold, self.fn.d_out)
        return self.fn(pallas_layernorm(x, self.gamma, self.beta), **kwargs)


# ---------------------------------------------------------------------------
# Reference + demo
# ---------------------------------------------------------------------------
def _reference(x, gamma, beta, weight, bias):
    x = x.astype(jnp.float32)
    mean = jnp.mean(x, axis=-1, keepdims=True)
    var = jnp.mean((x - mean) ** 2, axis=-1, keepdims=True)
    y = (x - mean) * jax.lax.rsqrt(var + LN_EPS) * gamma + beta
    return y @ weight.T.astype(jnp.float32) + bias.astype(jnp.float32)


if __name__ == "__main__":
    key = jax.random.PRNGKey(0)
    k = jax.random.split(key, 8)

    # Primary small shapes: (B, S, D) = (2, 8, 32), Linear D -> D.
    B, S, D = 2, 8, 32
    x = jax.random.normal(k[0], (B, S, D), dtype=jnp.float32)
    weight = jax.random.normal(k[1], (D, D), dtype=jnp.float32) * 0.05   # torch (D_out, D_in)
    bias = jax.random.normal(k[2], (D,), dtype=jnp.float32) * 0.01
    gamma = 1.0 + 0.1 * jax.random.normal(k[3], (D,), dtype=jnp.float32)
    beta = 0.1 * jax.random.normal(k[4], (D,), dtype=jnp.float32)
    ref = _reference(x, gamma, beta, weight, bias)

    # 1) Fused PreNorm+Linear, f32 MXU operands (bit-close to the reference).
    pre_f32 = PreNorm(D, PallasLinear(weight, bias, compute_dtype=jnp.float32),
                      gamma=gamma, beta=beta)
    out_f32 = jax.block_until_ready(jax.jit(lambda a: pre_f32(a))(x))
    assert out_f32.shape == (B, S, D)
    assert jnp.allclose(out_f32, ref, atol=2e-4, rtol=2e-4), "fused f32 mismatch"

    # 2) Fused PreNorm+Linear, bf16 MXU operands (default fast path).
    pre_bf16 = PreNorm(D, PallasLinear(weight, bias), gamma=gamma, beta=beta)
    out_bf16 = jax.block_until_ready(jax.jit(lambda a: pre_bf16(a))(x))
    assert jnp.allclose(out_bf16, ref, atol=2e-2, rtol=2e-2), "fused bf16 mismatch"

    # 3) Unfused fallback: standalone LN kernel -> standalone linear kernel.
    out_unfused = jax.block_until_ready(pre_f32.fn(pallas_layernorm(x, gamma, beta)))
    assert jnp.allclose(out_unfused, ref, atol=2e-4, rtol=2e-4), "unfused mismatch"

    # 4) N-tiled fused kernel: partial row blocks + non-lane-multiple D_out.
    B2, S2, Din2, Dout2 = 2, 9, 48, 320
    x2 = jax.random.normal(k[5], (B2, S2, Din2), dtype=jnp.float32)
    w2 = jax.random.normal(k[6], (Dout2, Din2), dtype=jnp.float32) * 0.05
    b2 = jax.random.normal(k[7], (Dout2,), dtype=jnp.float32) * 0.01
    pre2 = PreNorm(Din2, PallasLinear(w2, b2, compute_dtype=jnp.float32))
    ref2 = _reference(x2, pre2.gamma, pre2.beta, w2, b2)
    out2 = jax.block_until_ready(
        fused_prenorm_linear(x2, pre2._w_fold, pre2._b_fold, Dout2,
                             block_rows=8, force_ntiled=True, block_n=128))
    assert out2.shape == (B2, S2, Dout2)
    assert jnp.allclose(out2, ref2, atol=2e-4, rtol=2e-4), "ntiled mismatch"

    print("KERNEL_OK")
</pallas_src>

<mosaic_0001>
module attributes {stable_mosaic.version = 11 : i64} {
  func.func @_fused_resident_kernel(%arg0: i32, %arg1: memref<16x32xf32, #tpu.memory_space<vmem>>, %arg2: memref<32x128xf32, #tpu.memory_space<vmem>>, %arg3: memref<1x128xf32, #tpu.memory_space<vmem>>, %arg4: memref<16x128xf32, #tpu.memory_space<vmem>>) attributes {dimension_semantics = [#tpu.dimension_semantics<parallel>], iteration_bounds = array<i64: 1>, scalar_prefetch = 0 : i64, scratch_operands = 0 : i64, tpu.core_type = #tpu.core_type<tc>, window_params = [{transform_indices = @transform_0, window_bounds = array<i64: 16, 32>}, {pipeline_mode = #tpu.pipeline_mode<synchronous>, transform_indices = @transform_1, window_bounds = array<i64: 32, 128>}, {pipeline_mode = #tpu.pipeline_mode<synchronous>, transform_indices = @transform_2, window_bounds = array<i64: 1, 128>}, {transform_indices = @transform_3, window_bounds = array<i64: 16, 128>}]} {
    %c0 = arith.constant 0 : index
    %c0_0 = arith.constant 0 : index
    %0 = vector.load %arg1[%c0, %c0_0] : memref<16x32xf32, #tpu.memory_space<vmem>>, vector<16x32xf32>
    %cst = arith.constant dense<0.000000e+00> : vector<16xf32>
    %1 = vector.multi_reduction <add>, %0, %cst [1] : vector<16x32xf32> to vector<16xf32>
    %2 = vector.shape_cast %1 : vector<16xf32> to vector<16x1xf32>
    %3 = arith.mulf %0, %0 : vector<16x32xf32>
    %cst_1 = arith.constant dense<0.000000e+00> : vector<16xf32>
    %4 = vector.multi_reduction <add>, %3, %cst_1 [1] : vector<16x32xf32> to vector<16xf32>
    %5 = vector.shape_cast %4 : vector<16xf32> to vector<16x1xf32>
    %cst_2 = arith.constant 3.125000e-02 : f32
    %6 = vector.broadcast %cst_2 : f32 to vector<16x1xf32>
    %7 = arith.mulf %2, %6 : vector<16x1xf32>
    %cst_3 = arith.constant 3.125000e-02 : f32
    %8 = vector.broadcast %cst_3 : f32 to vector<16x1xf32>
    %9 = arith.mulf %5, %8 : vector<16x1xf32>
    %10 = arith.mulf %7, %7 : vector<16x1xf32>
    %11 = arith.subf %9, %10 : vector<16x1xf32>
    %cst_4 = arith.constant 0.000000e+00 : f32
    %12 = vector.broadcast %cst_4 : f32 to vector<16x1xf32>
    %13 = arith.maximumf %11, %12 : vector<16x1xf32>
    %14 = vector.broadcast %7 : vector<16x1xf32> to vector<16x32xf32>
    %15 = arith.subf %0, %14 : vector<16x32xf32>
    %cst_5 = arith.constant 9.99999974E-6 : f32
    %16 = vector.broadcast %cst_5 : f32 to vector<16x1xf32>
    %17 = arith.addf %13, %16 : vector<16x1xf32>
    %18 = math.rsqrt %17 : vector<16x1xf32>
    %19 = vector.broadcast %18 : vector<16x1xf32> to vector<16x32xf32>
    %20 = arith.mulf %15, %19 : vector<16x32xf32>
    %c0_6 = arith.constant 0 : index
    %c0_7 = arith.constant 0 : index
    %21 = vector.load %arg2[%c0_6, %c0_7] : memref<32x128xf32, #tpu.memory_space<vmem>>, vector<32x128xf32>
    %cst_8 = arith.constant dense<0.000000e+00> : vector<16x128xf32>
    %22 = tpu.matmul %20, %21, %cst_8 {dimension_numbers = #tpu.dot_dimension_numbers<[1], [0], [0], [1], [0, 0, 1, 1], [], []>} : vector<16x32xf32>, vector<32x128xf32>, vector<16x128xf32> -> vector<16x128xf32>
    %c0_9 = arith.constant 0 : index
    %c0_10 = arith.constant 0 : index
    %23 = vector.load %arg3[%c0_9, %c0_10] : memref<1x128xf32, #tpu.memory_space<vmem>>, vector<1x128xf32>
    %24 = vector.broadcast %23 : vector<1x128xf32> to vector<16x128xf32>
    %25 = arith.addf %22, %24 : vector<16x128xf32>
    %c0_11 = arith.constant 0 : index
    %c0_12 = arith.constant 0 : index
    %26 = vector.load %arg4[%c0_11, %c0_12] : memref<16x128xf32, #tpu.memory_space<vmem>>, vector<16x128xf32>
    tpu.vector_store %arg4[%c0_11, %c0_12], %25 {strides = array<i32>} : memref<16x128xf32, #tpu.memory_space<vmem>>, vector<16x128xf32>,
    return
  }
  func.func @transform_0(%arg0: i32) -> (i32, i32) {
    %c0_i32 = arith.constant 0 : i32
    %c0_i32_0 = arith.constant 0 : i32
    return %arg0, %c0_i32 : i32, i32
  }
  func.func @transform_1(%arg0: i32) -> (i32, i32) {
    %c0_i32 = arith.constant 0 : i32
    %c0_i32_0 = arith.constant 0 : i32
    %c0_i32_1 = arith.constant 0 : i32
    return %c0_i32, %c0_i32_0 : i32, i32
  }
  func.func @transform_2(%arg0: i32) -> (i32, i32) {
    %c0_i32 = arith.constant 0 : i32
    %c0_i32_0 = arith.constant 0 : i32
    %c0_i32_1 = arith.constant 0 : i32
    return %c0_i32, %c0_i32_0 : i32, i32
  }
  func.func @transform_3(%arg0: i32) -> (i32, i32) {
    %c0_i32 = arith.constant 0 : i32
    %c0_i32_0 = arith.constant 0 : i32
    return %arg0, %c0_i32 : i32, i32
  }
}

</mosaic_0001>

<llo_original>
// kernel: _lambda_.1
$region0: #{_lambda_.1}
  #allocation0 [shape = 'u32[]', space=smem, size = 0x4, offset = 0x4, fixed_abs, tag = 'smem constant byte address 0x4 - core index']
  #allocation1 [shape = 'u32[144,128]{1,0:T(1,128)}', space=vmem, size = 0x12000, scoped, tag = 'internal scratch']
  %s0 = inlined_call_operand.hbm [shape: f32[16,32], index: 0, kind: input, shape index: {}]
  %s1 = inlined_call_operand.hbm [shape: f32[32,128], index: 1, kind: input, shape index: {}]
  %s2 = inlined_call_operand.vmem [shape: f32[1,128], index: 2, kind: input, shape index: {}]
  %s3 = inlined_call_operand.vmem [shape: f32[16,128], index: 3, kind: output, shape index: {}]
  %s4 = sld [smem:[#allocation0]]
  $region30: #{_lambda_.1} parent=0
    _
  %s6 = ssub.s32 1, %s4
  %s7 = scalar_select 0, %s6, %s4
  $region1: #{_lambda_.1} parent=0
    #allocation2 [shape = 'u8[8192]{0}', space=vmem, size = 0x2000, scoped, tag = 'input window, operand 0, single buffered']
    #allocation3 [shape = 's32[1]{0}', space=sflag, size = 0x4, scoped, tag = 'scoped memory for _lambda_.1']
    #allocation4 [shape = 'u8[16384]{0}', space=vmem, size = 0x4000, scoped, tag = 'input window, operand 1, single buffered']
    #allocation5 [shape = 's32[1]{0}', space=sflag, size = 0x4, scoped, tag = 'scoped memory for _lambda_.1']
    %8 = vsyncpa [#allocation3], 0
    %9 = vsyncpa [#allocation5], 0
    // Predicated region
    $region2: #{_lambda_.1} parent=1 // pred_check
      _
    $region3: #{_lambda_.1} parent=1 // pred_check_branch
      %11 = sbr.rel (0) target = $region5
    $region4: #{_lambda_.1} parent=1 // pred_region
      %s13 = ssub.s32 256, 256
      %14 = vsyncadd [#allocation3], %s13
      %s15 = sshll.u32 [#allocation2], 4
      %s16 = int_to_ptr.vmem [resolvable:$true] %s15
      %21 = dma.hbm_to_vmem [thread:$0]  %s0, 256, %s16, [#allocation3], 128, 128, 8
    $region5: #{_lambda_.1} parent=1 // pred_fallthru
      _
    // Predicated region
    $region6: #{_lambda_.1} parent=1 // pred_check
      _
    $region7: #{_lambda_.1} parent=1 // pred_check_branch
      %23 = sbr.rel (0) target = $region9
    $region8: #{_lambda_.1} parent=1 // pred_region
      %s25 = ssub.s32 512, 512
      %26 = vsyncadd [#allocation5], %s25
      %s27 = sshll.u32 [#allocation4], 4
      %s28 = int_to_ptr.vmem [resolvable:$true] %s27
      %33 = dma.hbm_to_vmem [thread:$0]  %s1, 512, %s28, [#allocation5], 128, 128, 8
    $region9: #{_lambda_.1} parent=1 // pred_fallthru
      _
    // Predicated region
    $region10: #{_lambda_.1} parent=1 // pred_check
      _
    $region11: #{_lambda_.1} parent=1 // pred_check_branch
      %35 = sbr.rel (0) target = $region13
    $region12: #{_lambda_.1} parent=1 // pred_region
      _
    $region13: #{_lambda_.1} parent=1 // pred_fallthru
      _
    // Predicated region
    $region14: #{_lambda_.1} parent=1 // pred_check
      _
    $region15: #{_lambda_.1} parent=1 // pred_check_branch
      %37 = sbr.rel (0) target = $region17
    $region16: #{_lambda_.1} parent=1 // pred_region
      %38 = dma.done [#allocation3], 256
    $region17: #{_lambda_.1} parent=1 // pred_fallthru
      _
    // Predicated region
    $region18: #{_lambda_.1} parent=1 // pred_check
      _
    $region19: #{_lambda_.1} parent=1 // pred_check_branch
      %40 = sbr.rel (0) target = $region21
    $region20: #{_lambda_.1} parent=1 // pred_region
      %41 = dma.done [#allocation5], 512
    $region21: #{_lambda_.1} parent=1 // pred_fallthru
      _
    %v42 = vld [vmem:[#allocation2] sm:$0xff]
    %v43 = vld [vmem:[#allocation2 + $0x8] sm:$0xff]
    %vm44 = vcmask 261120
    %v45 = vsel %vm44, %v42, 0.0
    %46 = vadd.xlane.f32.xlu0 %v45
    %v47 = vpop.xlane.xlu0 %46
    %v48 = vsel %vm44, %v43, 0.0
    %49 = vadd.xlane.f32.xlu0 %v48
    %v50 = vpop.xlane.xlu0 %49
    %v51 = vmul.f32 %v42, %v42
    %v52 = vmul.f32 %v43, %v43
    %v53 = vsel %vm44, %v51, 0.0
    %54 = vadd.xlane.f32.xlu0 %v53
    %v55 = vpop.xlane.xlu0 %54
    %v56 = vsel %vm44, %v52, 0.0
    %57 = vadd.xlane.f32.xlu0 %v56
    %v58 = vpop.xlane.xlu0 %57
    %v59 = vmul.f32 %v47, 0.03125
    %v60 = vmul.f32 %v50, 0.03125
    %v61 = vmul.f32 %v55, 0.03125
    %v62 = vmul.f32 %v58, 0.03125
    %v63 = vmul.f32 %v59, %v59
    %v64 = vmul.f32 %v60, %v60
    %v65 = vsub.f32 %v61, %v63
    %v66 = vsub.f32 %v62, %v64
    %v67 = vmax.f32 %v65, 0.0
    %v68 = vmax.f32 %v66, 0.0
    %v69 = vsub.f32 %v42, %v59
    %v70 = vsub.f32 %v43, %v60
    %v71 = vadd.f32 %v67, 1e-05
    %v72 = vadd.f32 %v68, 1e-05
    %v73 = vrsqrt.pop %v71
    %v74 = vrsqrt.pop %v72
    %v75 = vmul.f32 %v69, %v73
    %v76 = vmul.f32 %v70, %v74
    %v77 = vld [vmem:[#allocation4] sm:$0xff]
    %v78 = vld [vmem:[#allocation4 + $0x8] sm:$0xff]
    %v79 = vld [vmem:[#allocation4 + $0x10] sm:$0xff]
    %v80 = vld [vmem:[#allocation4 + $0x18] sm:$0xff]
    %v81 = vld [vmem:[%s2] sm:$0x1]
    %v83 = vlaneseq
    %v84 = vshrl.u32 %v83, 7
    %v85 = vsub.s32 0, %v84
    %v86 = vrot.slane %v81, %v85
    %v89 = vsel %vm44, %v75, 0
    %v92 = vsel %vm44, %v76, 0
    %94 = vmatprep.subr.mxu0 0.0
    %95 = vmatpush1.msra.mxu0 %v77
    %96 = vmatprep.subr.mxu0 0.0
    %97 = vmatpush1.msra.mxu0 %v78
    %98 = vmatprep.subr.mxu0 0.0
    %99 = vmatpush1.msra.mxu0 %v79
    %100 = vmatprep.subr.mxu0 0.0
    %101 = vmatpush1.msra.mxu0 %v80
    %102 = vmatprep.subr.mxu0 0.0
    %103 = vmatpush1.msra.mxu0 0.0
    %104 = vmatprep.subr.mxu0 0.0
    %105 = vmatpush1.msra.mxu0 0.0
    %106 = vmatprep.subr.mxu0 0.0
    %107 = vmatpush1.msra.mxu0 0.0
    %108 = vmatprep.subr.mxu0 0.0
    %109 = vmatpush1.msra.mxu0 0.0
    %110 = vmatprep.subr.mxu0 0.0
    %111 = vmatpush1.msra.mxu0 0.0
    %112 = vmatprep.subr.mxu0 0.0
    %113 = vmatpush1.msra.mxu0 0.0
    %114 = vmatprep.subr.mxu0 0.0
    %115 = vmatpush1.msra.mxu0 0.0
    %116 = vmatprep.subr.mxu0 0.0
    %117 = vmatpush1.msra.mxu0 0.0
    %118 = vmatprep.subr.mxu0 0.0
    %119 = vmatpush1.msra.mxu0 0.0
    %120 = vmatprep.subr.mxu0 0.0
    %121 = vmatpush1.msra.mxu0 0.0
    %122 = vmatprep.subr.mxu0 0.0
    %123 = vmatpush1.msra.mxu0 0.0
    %124 = vmatprep.subr.mxu0 0.0
    %125 = vmatpush1.msra.mxu0 0.0
    %126 = vmatprep.subr.mxu0 0.0
    %127 = vmatpush1.msra.mxu0 0.0
    %128 = vmatprep.subr.mxu0 0.0
    %129 = vmatpush1.msra.mxu0 0.0
    %130 = vmatprep.subr.mxu0 0.0
    %131 = vmatpush1.msra.mxu0 0.0
    %132 = vmatprep.subr.mxu0 0.0
    %133 = vmatpush1.msra.mxu0 0.0
    %134 = vmatprep.subr.mxu0 0.0
    %135 = vmatpush1.msra.mxu0 0.0
    %136 = vmatprep.subr.mxu0 0.0
    %137 = vmatpush1.msra.mxu0 0.0
    %138 = vmatprep.subr.mxu0 0.0
    %139 = vmatpush1.msra.mxu0 0.0
    %140 = vmatprep.subr.mxu0 0.0
    %141 = vmatpush1.msra.mxu0 0.0
    %142 = vmatprep.subr.mxu0 0.0
    %143 = vmatpush1.msra.mxu0 0.0
    %144 = vmatprep.subr.mxu0 0.0
    %145 = vmatpush1.msra.mxu0 0.0
    %146 = vmatprep.subr.mxu0 0.0
    %147 = vmatpush1.msra.mxu0 0.0
    %148 = vmatprep.subr.mxu0 0.0
    %149 = vmatpush1.msra.mxu0 0.0
    %150 = vmatprep.subr.mxu0 0.0
    %151 = vmatpush1.msra.mxu0 0.0
    %152 = vmatprep.subr.mxu0 0.0
    %153 = vmatpush1.msra.mxu0 0.0
    %154 = vmatprep.subr.mxu0 0.0
    %155 = vmatpush1.msra.mxu0 0.0
    %156 = vmatprep.subr.mxu0 0.0
    %157 = vmatpush1.msra.mxu0 0.0
    %158 = vmatprep.mubr.f32.mxu0 0.0
    %159 = vmatmul.mubr.f32.gmra.mrb[0].mxu0 %v89
    %v160 = vpop.f32.mrb[0].mxu0
    %v161 = vadd.f32 %v86, %v160
    %v162 = vpop.f32.mrb[0].mxu0
    %163 = vmatprep.mubr.f32.mxu0 0.0
    %164 = vmatmul.mubr.f32.gmra.mrb[0].mxu0 %v92
    %v165 = vpop.f32.mrb[0].mxu0
    %v166 = vadd.f32 %v86, %v165
    %v167 = vpop.f32.mrb[0].mxu0
    %168 = vdwg.mxu0
    %169 = vst [vmem:[%s3] sm:$0xff] %v161
    %170 = vst [vmem:[%s3 + $0x8] sm:$0xff] %v166
    // Predicated region
    $region22: #{_lambda_.1} parent=1 // pred_check
      _
    $region23: #{_lambda_.1} parent=1 // pred_check_branch
      %172 = sbr.rel (0) target = $region25
    $region24: #{_lambda_.1} parent=1 // pred_region
      _
    $region25: #{_lambda_.1} parent=1 // pred_fallthru
      _
    // Predicated region
    $region26: #{_lambda_.1} parent=1 // pred_check
      _
    $region27: #{_lambda_.1} parent=1 // pred_check_branch
      %174 = sbr.rel (0) target = $region29
    $region28: #{_lambda_.1} parent=1 // pred_region
      _
    $region29: #{_lambda_.1} parent=1 // pred_fallthru
      _
    %175 = vsyncpa [#allocation3], 1
    %176 = vsyncpa [#allocation5], 1

</llo_original>
